<compile_context>
chip_gen: v5e
topology: v5e:2x2
jax: 0.10.0
libtpu: 0.0.40
codegen_flags: <defaults>
</compile_context>

<pallas_src>
import jax
import jax.numpy as jnp
from jax.experimental import pallas as pl
from jax.experimental.pallas import tpu as pltpu


def _concat_linear_kernel(t_ref, x_ref, w_ref, wt_ref, b_ref, o_ref):
    """One row-tile per grid step.

    t_ref  : (1, 1)              SMEM scalar t
    x_ref  : (block_n, dim_in)   VMEM input rows
    w_ref  : (dim_in, dim_out)   VMEM weight for the x part (W[:, 1:].T)
    wt_ref : (1, dim_out)        VMEM weight column for the time input (W[:, 0])
    b_ref  : (1, dim_out)        VMEM bias
    o_ref  : (block_n, dim_out)  VMEM output rows
    """
    t = t_ref[0, 0]
    # Single MXU matmul, f32 accumulation.
    acc = jnp.dot(x_ref[...], w_ref[...], preferred_element_type=jnp.float32)
    # Fused bias: the concatenated time column reduces to t * W[:, 0] + b.
    bias = b_ref[...].astype(jnp.float32) + t * wt_ref[...].astype(jnp.float32)
    o_ref[...] = (acc + bias).astype(o_ref.dtype)


def _choose_row_tiling(n_rows):
    """Single block for small N; 512-row tiles (8-sublane aligned) otherwise."""
    if n_rows <= 1024:
        return n_rows, 1
    block_n = 512
    return block_n, pl.cdiv(n_rows, block_n)


def concat_linear(t, x, weight, bias):
    """t: scalar, x: [N, dim_in], weight: [dim_out, dim_in + 1], bias: [dim_out].

    Returns [N, dim_out], matching the PyTorch ConcatLinear forward."""
    N, dim_in = x.shape
    dim_out, din_p1 = weight.shape
    assert din_p1 == dim_in + 1, (weight.shape, x.shape)

    # Split the Linear weight: column 0 multiplies the broadcast t, the rest
    # multiplies x.  Transpose once in the wrapper so the kernel contracts the
    # leading (sublane) dim and keeps dim_out lane-dense.
    w_x = jnp.transpose(weight[:, 1:], (1, 0)).astype(x.dtype)   # (dim_in, dim_out)
    w_t = weight[:, 0].reshape(1, dim_out)                       # (1, dim_out)
    b2 = bias.reshape(1, dim_out)                                # (1, dim_out)
    t2 = jnp.asarray(t, jnp.float32).reshape(1, 1)               # SMEM scalar

    block_n, grid_n = _choose_row_tiling(N)

    return pl.pallas_call(
        _concat_linear_kernel,
        out_shape=jax.ShapeDtypeStruct((N, dim_out), x.dtype),
        grid_spec=pltpu.PrefetchScalarGridSpec(
            num_scalar_prefetch=0,
            grid=(grid_n,),
            in_specs=[
                pl.BlockSpec(memory_space=pltpu.MemorySpace.SMEM),        # t
                pl.BlockSpec((block_n, dim_in), lambda i: (i, 0)),        # x rows
                pl.BlockSpec((dim_in, dim_out), lambda i: (0, 0)),        # W_x^T
                pl.BlockSpec((1, dim_out), lambda i: (0, 0)),             # W_t
                pl.BlockSpec((1, dim_out), lambda i: (0, 0)),             # bias
            ],
            out_specs=pl.BlockSpec((block_n, dim_out), lambda i: (i, 0)),
        ),
        compiler_params=pltpu.CompilerParams(dimension_semantics=("parallel",)),
    )(t2, x, w_x, w_t, b2)


def _reference(t, x, weight, bias):
    """Plain-JAX reference (same math as the PyTorch module)."""
    tt = jnp.full((x.shape[0], 1), t, dtype=x.dtype)
    ttx = jnp.concatenate([tt, x], axis=1)
    return ttx @ weight.T + bias


def _run_case(key, N, dim_in, dim_out):
    k_x, k_w, k_b, k_t = jax.random.split(key, 4)
    x = jax.random.normal(k_x, (N, dim_in), jnp.float32)
    # PyTorch-style uniform init over fan_in = dim_in + 1 (deterministic, synthetic).
    bound = 1.0 / ((dim_in + 1) ** 0.5)
    weight = jax.random.uniform(k_w, (dim_out, dim_in + 1), jnp.float32, -bound, bound)
    bias = jax.random.uniform(k_b, (dim_out,), jnp.float32, -bound, bound)
    t = jax.random.uniform(k_t, (), jnp.float32)

    out = concat_linear(t, x, weight, bias)
    jax.block_until_ready(out)

    ref = _reference(t, x, weight, bias)
    assert out.shape == (N, dim_out), out.shape
    err = float(jnp.max(jnp.abs(out - ref)))
    assert jnp.allclose(out, ref, atol=1e-5, rtol=1e-5), err


if __name__ == "__main__":
    key = jax.random.PRNGKey(0)
    k0, k1 = jax.random.split(key)

    # Small shapes implied by the module: x is [N, dim_in]; Linear(dim_in+1, dim_out).
    _run_case(k0, N=8, dim_in=32, dim_out=32)
    # Exercise the tiled (multi-step, partial-final-block) path as well.
    _run_case(k1, N=1300, dim_in=32, dim_out=64)

    print("KERNEL_OK")
</pallas_src>

<mosaic_0001>
module attributes {stable_mosaic.version = 11 : i64} {
  func.func @_concat_linear_kernel(%arg0: i32, %arg1: memref<1x1xf32, #tpu.memory_space<smem>>, %arg2: memref<8x32xf32, #tpu.memory_space<vmem>>, %arg3: memref<32x32xf32, #tpu.memory_space<vmem>>, %arg4: memref<1x32xf32, #tpu.memory_space<vmem>>, %arg5: memref<1x32xf32, #tpu.memory_space<vmem>>, %arg6: memref<8x32xf32, #tpu.memory_space<vmem>>) attributes {dimension_semantics = [#tpu.dimension_semantics<parallel>], iteration_bounds = array<i64: 1>, scalar_prefetch = 0 : i64, scratch_operands = 0 : i64, tpu.core_type = #tpu.core_type<tc>, window_params = [{transform_indices = @transform_0, window_bounds = array<i64: 1, 1>}, {transform_indices = @transform_1, window_bounds = array<i64: 8, 32>}, {pipeline_mode = #tpu.pipeline_mode<synchronous>, transform_indices = @transform_2, window_bounds = array<i64: 32, 32>}, {pipeline_mode = #tpu.pipeline_mode<synchronous>, transform_indices = @transform_3, window_bounds = array<i64: 1, 32>}, {pipeline_mode = #tpu.pipeline_mode<synchronous>, transform_indices = @transform_4, window_bounds = array<i64: 1, 32>}, {transform_indices = @transform_5, window_bounds = array<i64: 8, 32>}]} {
    %c0 = arith.constant 0 : index
    %c0_0 = arith.constant 0 : index
    %0 = memref.load %arg1[%c0, %c0_0] : memref<1x1xf32, #tpu.memory_space<smem>>
    %c0_1 = arith.constant 0 : index
    %c0_2 = arith.constant 0 : index
    %1 = vector.load %arg2[%c0_1, %c0_2] : memref<8x32xf32, #tpu.memory_space<vmem>>, vector<8x32xf32>
    %c0_3 = arith.constant 0 : index
    %c0_4 = arith.constant 0 : index
    %2 = vector.load %arg3[%c0_3, %c0_4] : memref<32x32xf32, #tpu.memory_space<vmem>>, vector<32x32xf32>
    %cst = arith.constant dense<0.000000e+00> : vector<8x32xf32>
    %3 = tpu.matmul %1, %2, %cst {dimension_numbers = #tpu.dot_dimension_numbers<[1], [0], [0], [1], [0, 0, 1, 1], [], []>} : vector<8x32xf32>, vector<32x32xf32>, vector<8x32xf32> -> vector<8x32xf32>
    %c0_5 = arith.constant 0 : index
    %c0_6 = arith.constant 0 : index
    %4 = vector.load %arg5[%c0_5, %c0_6] : memref<1x32xf32, #tpu.memory_space<vmem>>, vector<1x32xf32>
    %c0_7 = arith.constant 0 : index
    %c0_8 = arith.constant 0 : index
    %5 = vector.load %arg4[%c0_7, %c0_8] : memref<1x32xf32, #tpu.memory_space<vmem>>, vector<1x32xf32>
    %6 = vector.broadcast %0 : f32 to vector<1x32xf32>
    %7 = arith.mulf %6, %5 : vector<1x32xf32>
    %8 = arith.addf %4, %7 : vector<1x32xf32>
    %9 = vector.broadcast %8 : vector<1x32xf32> to vector<8x32xf32>
    %10 = arith.addf %3, %9 : vector<8x32xf32>
    %c0_9 = arith.constant 0 : index
    %c0_10 = arith.constant 0 : index
    %11 = vector.load %arg6[%c0_9, %c0_10] : memref<8x32xf32, #tpu.memory_space<vmem>>, vector<8x32xf32>
    tpu.vector_store %arg6[%c0_9, %c0_10], %10 {strides = array<i32>} : memref<8x32xf32, #tpu.memory_space<vmem>>, vector<8x32xf32>,
    return
  }
  func.func @transform_0(%arg0: i32) -> (i32, i32) {
    %c0_i32 = arith.constant 0 : i32
    %c0_i32_0 = arith.constant 0 : i32
    %c0_i32_1 = arith.constant 0 : i32
    return %c0_i32, %c0_i32_0 : i32, i32
  }
  func.func @transform_1(%arg0: i32) -> (i32, i32) {
    %c0_i32 = arith.constant 0 : i32
    %c0_i32_0 = arith.constant 0 : i32
    return %arg0, %c0_i32 : i32, i32
  }
  func.func @transform_2(%arg0: i32) -> (i32, i32) {
    %c0_i32 = arith.constant 0 : i32
    %c0_i32_0 = arith.constant 0 : i32
    %c0_i32_1 = arith.constant 0 : i32
    return %c0_i32, %c0_i32_0 : i32, i32
  }
  func.func @transform_3(%arg0: i32) -> (i32, i32) {
    %c0_i32 = arith.constant 0 : i32
    %c0_i32_0 = arith.constant 0 : i32
    %c0_i32_1 = arith.constant 0 : i32
    return %c0_i32, %c0_i32_0 : i32, i32
  }
  func.func @transform_4(%arg0: i32) -> (i32, i32) {
    %c0_i32 = arith.constant 0 : i32
    %c0_i32_0 = arith.constant 0 : i32
    %c0_i32_1 = arith.constant 0 : i32
    return %c0_i32, %c0_i32_0 : i32, i32
  }
  func.func @transform_5(%arg0: i32) -> (i32, i32) {
    %c0_i32 = arith.constant 0 : i32
    %c0_i32_0 = arith.constant 0 : i32
    return %arg0, %c0_i32 : i32, i32
  }
}

</mosaic_0001>

<llo_original>
// kernel: tpu_custom_call.1
$region0: #{tpu_custom_call.1}
  #allocation0 [shape = 'u32[]', space=smem, size = 0x4, offset = 0x4, fixed_abs, tag = 'smem constant byte address 0x4 - core index']
  #allocation1 [shape = 'u32[72,128]{1,0:T(1,128)}', space=vmem, size = 0x9000, scoped, tag = 'internal scratch']
  #allocation2 [shape = 'f32[1,1]{1,0:T(1,128)S(6)}', space=smem, size = 0x200, scoped, tag = 'scoped memory for tpu_custom_call.1']
  %s0 = inlined_call_operand.<no memory space> [shape: f32[1,1], index: 0, kind: input, shape index: {}]
  %s1 = inlined_call_operand.hbm [shape: f32[8,32], index: 1, kind: input, shape index: {}]
  %s2 = inlined_call_operand.hbm [shape: f32[32,32], index: 2, kind: input, shape index: {}]
  %s3 = inlined_call_operand.vmem [shape: f32[1,32], index: 3, kind: input, shape index: {}]
  %s4 = inlined_call_operand.vmem [shape: f32[1,32], index: 4, kind: input, shape index: {}]
  %s5 = inlined_call_operand.hbm [shape: f32[8,32], index: 5, kind: output, shape index: {}]
  %s6 = sld [smem:[#allocation0]]
  $region38: #{tpu_custom_call.1} parent=0
    _
  %s8 = ssub.s32 1, %s6
  %s9 = scalar_select 0, %s8, %s6
  %10 = sst [smem:[#allocation2]] %s0
  $region1: #{tpu_custom_call.1} parent=0
    #allocation3 [shape = 'u8[4096]{0}', space=vmem, size = 0x1000, scoped, tag = 'input window, operand 1, single buffered']
    #allocation4 [shape = 's32[1]{0}', space=sflag, size = 0x4, scoped, tag = 'scoped memory for tpu_custom_call.1']
    #allocation5 [shape = 's32[1]{0}', space=sflag, size = 0x4, scoped, tag = 'scoped memory for tpu_custom_call.1']
    #allocation6 [shape = 'u8[16384]{0}', space=vmem, size = 0x4000, scoped, tag = 'input window, operand 2, single buffered']
    #allocation7 [shape = 's32[1]{0}', space=sflag, size = 0x4, scoped, tag = 'scoped memory for tpu_custom_call.1']
    #allocation8 [shape = 'u8[4096]{0}', space=vmem, size = 0x1000, scoped, tag = 'output window, operand 0, single buffered']
    %11 = vsyncpa [#allocation4], 0
    %12 = vsyncpa [#allocation7], 0
    %13 = vsyncpa [#allocation5], 0
    // Predicated region
    $region2: #{tpu_custom_call.1} parent=1 // pred_check
      _
    $region3: #{tpu_custom_call.1} parent=1 // pred_check_branch
      %15 = sbr.rel (0) target = $region5
    $region4: #{tpu_custom_call.1} parent=1 // pred_region
      _
    $region5: #{tpu_custom_call.1} parent=1 // pred_fallthru
      _
    // Predicated region
    $region6: #{tpu_custom_call.1} parent=1 // pred_check
      _
    $region7: #{tpu_custom_call.1} parent=1 // pred_check_branch
      %17 = sbr.rel (0) target = $region9
    $region8: #{tpu_custom_call.1} parent=1 // pred_region
      %19 = vsyncadd [#allocation4], 0
      %s21 = sshll.u32 %s1, 4
      %s22 = int_to_ptr.hbm [resolvable:$true] %s21
      %s23 = sshll.u32 [#allocation3], 4
      %s24 = int_to_ptr.vmem [resolvable:$true] %s23
      %26 = dma.hbm_to_vmem [thread:$0]  %s22, 128, %s24, [#allocation4]
    $region9: #{tpu_custom_call.1} parent=1 // pred_fallthru
      _
    // Predicated region
    $region10: #{tpu_custom_call.1} parent=1 // pred_check
      _
    $region11: #{tpu_custom_call.1} parent=1 // pred_check_branch
      %28 = sbr.rel (0) target = $region13
    $region12: #{tpu_custom_call.1} parent=1 // pred_region
      %30 = vsyncadd [#allocation7], 0
      %s31 = sshll.u32 %s2, 4
      %s32 = int_to_ptr.hbm [resolvable:$true] %s31
      %s33 = sshll.u32 [#allocation6], 4
      %s34 = int_to_ptr.vmem [resolvable:$true] %s33
      %39 = dma.hbm_to_vmem [thread:$0]  %s32, 512, %s34, [#allocation7], 128, 128, 8
    $region13: #{tpu_custom_call.1} parent=1 // pred_fallthru
      _
    // Predicated region
    $region14: #{tpu_custom_call.1} parent=1 // pred_check
      _
    $region15: #{tpu_custom_call.1} parent=1 // pred_check_branch
      %41 = sbr.rel (0) target = $region17
    $region16: #{tpu_custom_call.1} parent=1 // pred_region
      _
    $region17: #{tpu_custom_call.1} parent=1 // pred_fallthru
      _
    // Predicated region
    $region18: #{tpu_custom_call.1} parent=1 // pred_check
      _
    $region19: #{tpu_custom_call.1} parent=1 // pred_check_branch
      %43 = sbr.rel (0) target = $region21
    $region20: #{tpu_custom_call.1} parent=1 // pred_region
      _
    $region21: #{tpu_custom_call.1} parent=1 // pred_fallthru
      _
    // Predicated region
    $region22: #{tpu_custom_call.1} parent=1 // pred_check
      _
    $region23: #{tpu_custom_call.1} parent=1 // pred_check_branch
      %45 = sbr.rel (0) target = $region25
    $region24: #{tpu_custom_call.1} parent=1 // pred_region
      %47 = dma.done [#allocation4], 128
    $region25: #{tpu_custom_call.1} parent=1 // pred_fallthru
      _
    // Predicated region
    $region26: #{tpu_custom_call.1} parent=1 // pred_check
      _
    $region27: #{tpu_custom_call.1} parent=1 // pred_check_branch
      %49 = sbr.rel (0) target = $region29
    $region28: #{tpu_custom_call.1} parent=1 // pred_region
      %51 = dma.done [#allocation7], 512
    $region29: #{tpu_custom_call.1} parent=1 // pred_fallthru
      _
    %s52 = sld [smem:[#allocation2]]
    %v53 = vld [vmem:[#allocation3] sm:$0xff]
    %v54 = vld [vmem:[#allocation6] sm:$0xff]
    %v55 = vld [vmem:[#allocation6 + $0x8] sm:$0xff]
    %v56 = vld [vmem:[#allocation6 + $0x10] sm:$0xff]
    %v57 = vld [vmem:[#allocation6 + $0x18] sm:$0xff]
    %v58 = vld [vmem:[%s4] sm:$0x1]
    %v59 = vld [vmem:[%s3] sm:$0x1]
    %v60 = vstv %s52
    %v61 = vmul.f32 %v60, %v59
    %v62 = vadd.f32 %v58, %v61
    %v64 = vperm.slane %v62, 0
    %vm66 = vcmask 261120
    %v68 = vsel %vm66, %v53, 0
    %70 = vmatpush.msra.mxu0 0.0
    %71 = vmatpush.msra.mxu0 0.0
    %72 = vmatpush.msra.mxu0 0.0
    %73 = vmatpush.msra.mxu0 0.0
    %74 = vmatpush.msra.mxu0 0.0
    %75 = vmatpush.msra.mxu0 0.0
    %76 = vmatpush.msra.mxu0 0.0
    %77 = vmatpush.msra.mxu0 0.0
    %78 = vmatpush.msra.mxu0 0.0
    %79 = vmatpush.msra.mxu0 0.0
    %80 = vmatpush.msra.mxu0 0.0
    %81 = vmatpush.msra.mxu0 0.0
    %82 = vmatpush.msra.mxu0 %v57
    %83 = vmatpush.msra.mxu0 %v56
    %84 = vmatpush.msra.mxu0 %v55
    %85 = vmatpush.msra.mxu0 %v54
    %86 = vmatmul.f32.gmra.mxu0 %v68
    %v87 = vpop.f32.mrf.mxu0
    %v88 = vadd.f32 %v64, %v87
    %89 = vdwg.mxu0
    %90 = vst.msk [vmem:[#allocation8] sm:$0xff] %vm66, %v88
    // Predicated region
    $region30: #{tpu_custom_call.1} parent=1 // pred_check
      _
    $region31: #{tpu_custom_call.1} parent=1 // pred_check_branch
      %92 = sbr.rel (0) target = $region33
    $region32: #{tpu_custom_call.1} parent=1 // pred_region
      %94 = vsyncadd [#allocation5], 0
      %s96 = sshll.u32 [#allocation8], 4
      %s97 = int_to_ptr.vmem [resolvable:$true] %s96
      %s98 = sshll.u32 %s5, 4
      %s99 = int_to_ptr.hbm [resolvable:$true] %s98
      %101 = dma.vmem_to_hbm [thread:$0]  %s97, 128, %s99, [#allocation5]
    $region33: #{tpu_custom_call.1} parent=1 // pred_fallthru
      _
    // Predicated region
    $region34: #{tpu_custom_call.1} parent=1 // pred_check
      _
    $region35: #{tpu_custom_call.1} parent=1 // pred_check_branch
      %103 = sbr.rel (0) target = $region37
    $region36: #{tpu_custom_call.1} parent=1 // pred_region
      %105 = dma.done [#allocation5], 128
    $region37: #{tpu_custom_call.1} parent=1 // pred_fallthru
      _
    %106 = vsyncpa [#allocation4], 1
    %107 = vsyncpa [#allocation7], 1
    %108 = vsyncpa [#allocation5], 1

</llo_original>
